<compile_context>
chip_gen: v7x
topology: tpu7x:2x2x1
jax: 0.10.0
libtpu: 0.0.40
codegen_flags: <defaults>
</compile_context>

<pallas_src>
from typing import NamedTuple, Optional

import jax
import jax.numpy as jnp
from jax.experimental import pallas as pl
from jax.experimental.pallas import tpu as pltpu

_LANES = 128
_SUBLANES = 8
# Conservative single-block VMEM budget: safe under v5e's 16 MiB scoped default
# and v7x's 64 MiB physical VMEM.
_SINGLE_BLOCK_VMEM_BUDGET = 8 * 1024 * 1024


def _round_up(x, m):
    return ((x + m - 1) // m) * m


class EmbeddingParams(NamedTuple):
    # w_all: [D, P]  lanes [0:E) = W_embed, lanes [E:E+C) = W_embed @ W_cls
    # b_all: [1, P]  lanes [0:E) = b_embed, lanes [E:E+C) = b_embed @ W_cls + b_cls
    w_all: jax.Array
    b_all: jax.Array
    embedding_size: int
    nof_classes: int


def prepare_embedding_params(w_embed, b_embed, w_cls, b_cls) -> EmbeddingParams:
    """Build the fused, lane-padded weight/bias slab ONCE at parameter-load time.

    Folds the classifier through the embedding projection:
        logits = (x @ W_e + b_e) @ W_c + b_c = x @ (W_e @ W_c) + (b_e @ W_c + b_c)
    so the kernel issues a single independent MXU matmul and one lane-dense
    unmasked store per row tile.
    """
    d, e = w_embed.shape
    c = w_cls.shape[1]
    p = _round_up(e + c, _LANES)

    w_e32 = w_embed.astype(jnp.float32)
    b_e32 = b_embed.astype(jnp.float32)
    w_c32 = w_cls.astype(jnp.float32)
    b_c32 = b_cls.astype(jnp.float32)

    w_fused = jnp.dot(w_e32, w_c32, preferred_element_type=jnp.float32)          # [D, C]
    b_fused = jnp.dot(b_e32, w_c32, preferred_element_type=jnp.float32) + b_c32  # [1, C]

    w_all = jnp.zeros((d, p), w_embed.dtype)
    w_all = w_all.at[:, :e].set(w_embed).at[:, e:e + c].set(w_fused.astype(w_embed.dtype))
    b_all = jnp.zeros((1, p), jnp.float32)
    b_all = b_all.at[:, :e].set(b_e32).at[:, e:e + c].set(b_fused)

    return EmbeddingParams(w_all=w_all, b_all=b_all, embedding_size=e, nof_classes=c)


def _fused_proj_kernel(x_ref, w_ref, b_ref, out_ref):
    """One MXU matmul (f32 accumulate) + bias, one lane-dense store.

    x_ref   : [tile_n, D]  native dtype
    w_ref   : [D, P]       native dtype (fused slab)
    b_ref   : [1, P]       f32
    out_ref : [tile_n, P]  out_dtype  (lanes [0:E) = emb, [E:E+C) = logits)
    """
    acc = jnp.dot(x_ref[...], w_ref[...], preferred_element_type=jnp.float32)
    out_ref[...] = (acc + b_ref[...]).astype(out_ref.dtype)


def embedding_generator_forward(
    x,
    params: EmbeddingParams,
    *,
    tile_n: int = 1024,
    out_dtype: Optional[jnp.dtype] = None,
    single_block_budget_bytes: int = _SINGLE_BLOCK_VMEM_BUDGET,
):
    """Returns (embeddings [N, E], class logits [N, C])."""
    n, d = x.shape
    e = params.embedding_size
    c = params.nof_classes
    w_all, b_all = params.w_all, params.b_all
    p = w_all.shape[1]

    if out_dtype is None:
        # Pass jnp.bfloat16 to halve the dominant HBM writeback stream when
        # downstream consumers tolerate bf16 embeddings.
        out_dtype = x.dtype
    out_itemsize = jnp.dtype(out_dtype).itemsize

    single_block_bytes = (
        n * d * x.dtype.itemsize
        + w_all.size * w_all.dtype.itemsize
        + b_all.size * b_all.dtype.itemsize
        + n * p * out_itemsize
    )

    if single_block_bytes <= single_block_budget_bytes:
        # ---- Small/medium path: whole problem is one VMEM block; no grid,
        # no pipeline bookkeeping, no padding copies.
        vmem = pl.BlockSpec(memory_space=pltpu.MemorySpace.VMEM)
        out = pl.pallas_call(
            _fused_proj_kernel,
            out_shape=jax.ShapeDtypeStruct((n, p), out_dtype),
            in_specs=[vmem, vmem, vmem],
            out_specs=vmem,
        )(x, w_all, b_all)
    else:
        # ---- Large-N path: tile the detection axis; weights/bias stay
        # resident (constant index_map), x/out stream through double-buffered
        # blocks. Cap the tile at ceil(n/2) (sublane-rounded) so the parallel
        # grid has >= 2 steps and both v7x TensorCores get work. No zero-pad
        # of x: the ragged last block uses Pallas boundary handling (OOB reads
        # are per-row-independent garbage, OOB writes are dropped).
        tile = max(_SUBLANES, min(tile_n, _round_up(pl.cdiv(n, 2), _SUBLANES)))
        grid = pl.cdiv(n, tile)
        out = pl.pallas_call(
            _fused_proj_kernel,
            out_shape=jax.ShapeDtypeStruct((n, p), out_dtype),
            grid=(grid,),
            in_specs=[
                pl.BlockSpec((tile, d), lambda i: (i, 0)),
                pl.BlockSpec((d, p), lambda i: (0, 0)),
                pl.BlockSpec((1, p), lambda i: (0, 0)),
            ],
            out_specs=pl.BlockSpec((tile, p), lambda i: (i, 0)),
            compiler_params=pltpu.CompilerParams(
                dimension_semantics=("parallel",),
            ),
        )(x, w_all, b_all)

    # Consumers that can take the packed [N, P] slab directly should, to skip
    # these two small slice copies; the module contract wants (emb, logits).
    emb = out[:, :e]
    logits = out[:, e:e + c]
    return emb, logits


def _reference(x, w_embed, b_embed, w_cls, b_cls):
    emb = x @ w_embed + b_embed
    logits = emb @ w_cls + b_cls
    return emb, logits


if __name__ == "__main__":
    # Module-consistent shapes: N detections, input feature dim D,
    # embedding_size E, nof_classes C.
    EMBEDDING_SIZE = 16
    NOF_CLASSES = 10
    D = 32

    key = jax.random.PRNGKey(0)
    k_x, k_we, k_be, k_wc, k_bc, k_x2 = jax.random.split(key, 6)

    w_embed = jax.random.normal(k_we, (D, EMBEDDING_SIZE), dtype=jnp.float32) * 0.05
    b_embed = jax.random.normal(k_be, (1, EMBEDDING_SIZE), dtype=jnp.float32) * 0.01
    w_cls = jax.random.normal(k_wc, (EMBEDDING_SIZE, NOF_CLASSES), dtype=jnp.float32) * 0.05
    b_cls = jax.random.normal(k_bc, (1, NOF_CLASSES), dtype=jnp.float32) * 0.01

    # Built once, "at parameter-load time" (hoisted out of the forward).
    params = prepare_embedding_params(w_embed, b_embed, w_cls, b_cls)
    params.w_all.block_until_ready()

    # --- small-N path (single VMEM block, no grid) ---
    N_SMALL = 8
    x_small = jax.random.normal(k_x, (N_SMALL, D), dtype=jnp.float32)
    emb, logits = embedding_generator_forward(x_small, params)
    emb = jax.block_until_ready(emb)
    logits = jax.block_until_ready(logits)

    emb_ref, logits_ref = _reference(x_small, w_embed, b_embed, w_cls, b_cls)
    assert emb.shape == (N_SMALL, EMBEDDING_SIZE)
    assert logits.shape == (N_SMALL, NOF_CLASSES)
    assert jnp.allclose(emb, emb_ref, atol=1e-5, rtol=1e-5)
    # Fused-weight logits differ only by summation order -> looser tolerance.
    assert jnp.allclose(logits, logits_ref, atol=1e-4, rtol=1e-4)

    # --- large-N path (tiled over detections, ragged last block, no padding) ---
    # Force the grid path at a small shape by shrinking the single-block budget.
    N_LARGE = 300
    x_large = jax.random.normal(k_x2, (N_LARGE, D), dtype=jnp.float32)
    emb2, logits2 = embedding_generator_forward(
        x_large, params, tile_n=128, single_block_budget_bytes=0
    )
    emb2 = jax.block_until_ready(emb2)
    logits2 = jax.block_until_ready(logits2)

    emb2_ref, logits2_ref = _reference(x_large, w_embed, b_embed, w_cls, b_cls)
    assert emb2.shape == (N_LARGE, EMBEDDING_SIZE)
    assert logits2.shape == (N_LARGE, NOF_CLASSES)
    assert jnp.allclose(emb2, emb2_ref, atol=1e-5, rtol=1e-5)
    assert jnp.allclose(logits2, logits2_ref, atol=1e-4, rtol=1e-4)

    print("KERNEL_OK")
</pallas_src>

<mosaic_0001>
module attributes {stable_mosaic.version = 11 : i64} {
  func.func @_fused_proj_kernel(%arg0: memref<8x32xf32, #tpu.memory_space<vmem>>, %arg1: memref<32x128xf32, #tpu.memory_space<vmem>>, %arg2: memref<1x128xf32, #tpu.memory_space<vmem>>, %arg3: memref<8x128xf32, #tpu.memory_space<vmem>>) attributes {dimension_semantics = [], scalar_prefetch = 0 : i64, scratch_operands = 0 : i64, tpu.core_type = #tpu.core_type<tc>} {
    %c0 = arith.constant 0 : index
    %c0_0 = arith.constant 0 : index
    %0 = vector.load %arg0[%c0, %c0_0] : memref<8x32xf32, #tpu.memory_space<vmem>>, vector<8x32xf32>
    %c0_1 = arith.constant 0 : index
    %c0_2 = arith.constant 0 : index
    %1 = vector.load %arg1[%c0_1, %c0_2] : memref<32x128xf32, #tpu.memory_space<vmem>>, vector<32x128xf32>
    %cst = arith.constant dense<0.000000e+00> : vector<8x128xf32>
    %2 = tpu.matmul %0, %1, %cst {dimension_numbers = #tpu.dot_dimension_numbers<[1], [0], [0], [1], [0, 0, 1, 1], [], []>} : vector<8x32xf32>, vector<32x128xf32>, vector<8x128xf32> -> vector<8x128xf32>
    %c0_3 = arith.constant 0 : index
    %c0_4 = arith.constant 0 : index
    %3 = vector.load %arg2[%c0_3, %c0_4] : memref<1x128xf32, #tpu.memory_space<vmem>>, vector<1x128xf32>
    %4 = vector.broadcast %3 : vector<1x128xf32> to vector<8x128xf32>
    %5 = arith.addf %2, %4 : vector<8x128xf32>
    %c0_5 = arith.constant 0 : index
    %c0_6 = arith.constant 0 : index
    %6 = vector.load %arg3[%c0_5, %c0_6] : memref<8x128xf32, #tpu.memory_space<vmem>>, vector<8x128xf32>
    tpu.vector_store %arg3[%c0_5, %c0_6], %5 {strides = array<i32>} : memref<8x128xf32, #tpu.memory_space<vmem>>, vector<8x128xf32>,
    return
  }
}

</mosaic_0001>

<llo_original>
// kernel: tpu_custom_call.1
$region0: #{tpu_custom_call.1}
  #allocation0 [shape = 'u32[]', space=smem, size = 0x4, offset = 0x4, fixed_abs, tag = 'smem constant byte address 0x4 - core index']
  #allocation1 [shape = 'u32[144,128]{1,0:T(1,128)}', space=vmem, size = 0x12000, scoped, tag = 'internal scratch']
  %s0 = inlined_call_operand.hbm [shape: f32[8,32], index: 0, kind: input, shape index: {}]
  %s1 = inlined_call_operand.hbm [shape: f32[32,128], index: 1, kind: input, shape index: {}]
  %s2 = inlined_call_operand.vmem [shape: f32[1,128], index: 2, kind: input, shape index: {}]
  %s3 = inlined_call_operand.hbm [shape: f32[8,128], index: 3, kind: output, shape index: {}]
  %s4 = sld [smem:[#allocation0]]
  $region30: #{tpu_custom_call.1} parent=0
    _
  %s6 = ssub.s32 1, %s4
  %s7 = scalar_select 0, %s6, %s4
  $region1: #{tpu_custom_call.1} parent=0
    #allocation2 [shape = 'u8[4096]{0}', space=vmem, size = 0x1000, scoped, tag = 'input window, operand 0, single buffered']
    #allocation3 [shape = 's32[1]{0}', space=sflag, size = 0x4, scoped, tag = 'scoped memory for tpu_custom_call.1']
    #allocation4 [shape = 's32[1]{0}', space=sflag, size = 0x4, scoped, tag = 'scoped memory for tpu_custom_call.1']
    #allocation5 [shape = 'u8[16384]{0}', space=vmem, size = 0x4000, scoped, tag = 'input window, operand 1, single buffered']
    #allocation6 [shape = 's32[1]{0}', space=sflag, size = 0x4, scoped, tag = 'scoped memory for tpu_custom_call.1']
    #allocation7 [shape = 'u8[4096]{0}', space=vmem, size = 0x1000, scoped, tag = 'output window, operand 0, single buffered']
    %8 = vsyncpa [#allocation3], 0
    %9 = vsyncpa [#allocation6], 0
    %10 = vsyncpa [#allocation4], 0
    // Predicated region
    $region2: #{tpu_custom_call.1} parent=1 // pred_check
      _
    $region3: #{tpu_custom_call.1} parent=1 // pred_check_branch
      %12 = sbr.rel (0) target = $region5
    $region4: #{tpu_custom_call.1} parent=1 // pred_region
      %s14 = ssub.s32 128, 128
      %15 = vsyncadd [#allocation3], %s14
      %s17 = sshll.u32 [#allocation2], 4
      %s18 = int_to_ptr.vmem [resolvable:$true] %s17
      %20 = dma.hbm_to_vmem [thread:$0]  %s0, 128, %s18, [#allocation3]
    $region5: #{tpu_custom_call.1} parent=1 // pred_fallthru
      _
    // Predicated region
    $region6: #{tpu_custom_call.1} parent=1 // pred_check
      _
    $region7: #{tpu_custom_call.1} parent=1 // pred_check_branch
      %22 = sbr.rel (0) target = $region9
    $region8: #{tpu_custom_call.1} parent=1 // pred_region
      %s24 = ssub.s32 512, 512
      %25 = vsyncadd [#allocation6], %s24
      %s26 = sshll.u32 [#allocation5], 4
      %s27 = int_to_ptr.vmem [resolvable:$true] %s26
      %32 = dma.hbm_to_vmem [thread:$0]  %s1, 512, %s27, [#allocation6], 128, 128, 8
    $region9: #{tpu_custom_call.1} parent=1 // pred_fallthru
      _
    // Predicated region
    $region10: #{tpu_custom_call.1} parent=1 // pred_check
      _
    $region11: #{tpu_custom_call.1} parent=1 // pred_check_branch
      %34 = sbr.rel (0) target = $region13
    $region12: #{tpu_custom_call.1} parent=1 // pred_region
      _
    $region13: #{tpu_custom_call.1} parent=1 // pred_fallthru
      _
    // Predicated region
    $region14: #{tpu_custom_call.1} parent=1 // pred_check
      _
    $region15: #{tpu_custom_call.1} parent=1 // pred_check_branch
      %36 = sbr.rel (0) target = $region17
    $region16: #{tpu_custom_call.1} parent=1 // pred_region
      %37 = dma.done [#allocation3], 128
    $region17: #{tpu_custom_call.1} parent=1 // pred_fallthru
      _
    // Predicated region
    $region18: #{tpu_custom_call.1} parent=1 // pred_check
      _
    $region19: #{tpu_custom_call.1} parent=1 // pred_check_branch
      %39 = sbr.rel (0) target = $region21
    $region20: #{tpu_custom_call.1} parent=1 // pred_region
      %40 = dma.done [#allocation6], 512
    $region21: #{tpu_custom_call.1} parent=1 // pred_fallthru
      _
    %v41 = vld [vmem:[#allocation2] sm:$0xff]
    %v42 = vld [vmem:[#allocation5] sm:$0xff]
    %v43 = vld [vmem:[#allocation5 + $0x8] sm:$0xff]
    %v44 = vld [vmem:[#allocation5 + $0x10] sm:$0xff]
    %v45 = vld [vmem:[#allocation5 + $0x18] sm:$0xff]
    %v46 = vld [vmem:[%s2] sm:$0x1]
    %v48 = vlaneseq
    %v49 = vshrl.u32 %v48, 7
    %v50 = vsub.s32 0, %v49
    %v51 = vrot.slane %v46, %v50
    %vm53 = vcmask 261120
    %v55 = vsel %vm53, %v41, 0
    %57 = vmatprep.subr.mxu0 0.0
    %58 = vmatpush1.msra.mxu0 %v42
    %59 = vmatprep.subr.mxu0 0.0
    %60 = vmatpush1.msra.mxu0 %v43
    %61 = vmatprep.subr.mxu0 0.0
    %62 = vmatpush1.msra.mxu0 %v44
    %63 = vmatprep.subr.mxu0 0.0
    %64 = vmatpush1.msra.mxu0 %v45
    %65 = vmatprep.subr.mxu0 0.0
    %66 = vmatpush1.msra.mxu0 0.0
    %67 = vmatprep.subr.mxu0 0.0
    %68 = vmatpush1.msra.mxu0 0.0
    %69 = vmatprep.subr.mxu0 0.0
    %70 = vmatpush1.msra.mxu0 0.0
    %71 = vmatprep.subr.mxu0 0.0
    %72 = vmatpush1.msra.mxu0 0.0
    %73 = vmatprep.subr.mxu0 0.0
    %74 = vmatpush1.msra.mxu0 0.0
    %75 = vmatprep.subr.mxu0 0.0
    %76 = vmatpush1.msra.mxu0 0.0
    %77 = vmatprep.subr.mxu0 0.0
    %78 = vmatpush1.msra.mxu0 0.0
    %79 = vmatprep.subr.mxu0 0.0
    %80 = vmatpush1.msra.mxu0 0.0
    %81 = vmatprep.subr.mxu0 0.0
    %82 = vmatpush1.msra.mxu0 0.0
    %83 = vmatprep.subr.mxu0 0.0
    %84 = vmatpush1.msra.mxu0 0.0
    %85 = vmatprep.subr.mxu0 0.0
    %86 = vmatpush1.msra.mxu0 0.0
    %87 = vmatprep.subr.mxu0 0.0
    %88 = vmatpush1.msra.mxu0 0.0
    %89 = vmatprep.subr.mxu0 0.0
    %90 = vmatpush1.msra.mxu0 0.0
    %91 = vmatprep.subr.mxu0 0.0
    %92 = vmatpush1.msra.mxu0 0.0
    %93 = vmatprep.subr.mxu0 0.0
    %94 = vmatpush1.msra.mxu0 0.0
    %95 = vmatprep.subr.mxu0 0.0
    %96 = vmatpush1.msra.mxu0 0.0
    %97 = vmatprep.subr.mxu0 0.0
    %98 = vmatpush1.msra.mxu0 0.0
    %99 = vmatprep.subr.mxu0 0.0
    %100 = vmatpush1.msra.mxu0 0.0
    %101 = vmatprep.subr.mxu0 0.0
    %102 = vmatpush1.msra.mxu0 0.0
    %103 = vmatprep.subr.mxu0 0.0
    %104 = vmatpush1.msra.mxu0 0.0
    %105 = vmatprep.subr.mxu0 0.0
    %106 = vmatpush1.msra.mxu0 0.0
    %107 = vmatprep.subr.mxu0 0.0
    %108 = vmatpush1.msra.mxu0 0.0
    %109 = vmatprep.subr.mxu0 0.0
    %110 = vmatpush1.msra.mxu0 0.0
    %111 = vmatprep.subr.mxu0 0.0
    %112 = vmatpush1.msra.mxu0 0.0
    %113 = vmatprep.subr.mxu0 0.0
    %114 = vmatpush1.msra.mxu0 0.0
    %115 = vmatprep.subr.mxu0 0.0
    %116 = vmatpush1.msra.mxu0 0.0
    %117 = vmatprep.subr.mxu0 0.0
    %118 = vmatpush1.msra.mxu0 0.0
    %119 = vmatprep.subr.mxu0 0.0
    %120 = vmatpush1.msra.mxu0 0.0
    %121 = vmatprep.mubr.f32.mxu0 0.0
    %122 = vmatmul.mubr.f32.gmra.mrb[0].mxu0 %v55
    %v123 = vpop.f32.mrb[0].mxu0
    %v124 = vadd.f32 %v51, %v123
    %v125 = vpop.f32.mrb[0].mxu0
    %126 = vdwg.mxu0
    %127 = vst [vmem:[#allocation7] sm:$0xff] %v124
    // Predicated region
    $region22: #{tpu_custom_call.1} parent=1 // pred_check
      _
    $region23: #{tpu_custom_call.1} parent=1 // pred_check_branch
      %129 = sbr.rel (0) target = $region25
    $region24: #{tpu_custom_call.1} parent=1 // pred_region
      %s131 = ssub.s32 128, 128
      %132 = vsyncadd [#allocation4], %s131
      %s134 = sshll.u32 [#allocation7], 4
      %s135 = int_to_ptr.vmem [resolvable:$true] %s134
      %137 = dma.vmem_to_hbm [thread:$0]  %s135, 128, %s3, [#allocation4]
    $region25: #{tpu_custom_call.1} parent=1 // pred_fallthru
      _
    // Predicated region
    $region26: #{tpu_custom_call.1} parent=1 // pred_check
      _
    $region27: #{tpu_custom_call.1} parent=1 // pred_check_branch
      %139 = sbr.rel (0) target = $region29
    $region28: #{tpu_custom_call.1} parent=1 // pred_region
      %140 = dma.done [#allocation4], 128
    $region29: #{tpu_custom_call.1} parent=1 // pred_fallthru
      _
    %141 = vsyncpa [#allocation3], 1
    %142 = vsyncpa [#allocation6], 1
    %143 = vsyncpa [#allocation4], 1

</llo_original>
